<compile_context>
chip_gen: v6e
topology: v6e:2x2x1
jax: 0.10.0
libtpu: 0.0.40
codegen_flags: <defaults>
</compile_context>

<pallas_src>
import functools

import jax
import jax.numpy as jnp
from jax.experimental import pallas as pl
from jax.experimental.pallas import tpu as pltpu

_LANES = 128
_SUBLANES = 8
_NEG_FILL = -1e30  # class-lane padding: exp(pad - m) underflows to 0, never argmax


def _round_up(x, m):
    return ((x + m - 1) // m) * m


def _ce_acc_kernel(logits_ref, labels_ref, parts_ref, *, batch_size, tile_rows):
    """Per-batch-tile CE partial sum + top-1 correct count (lane-dense output).

    parts_ref block is (1, 1, 128): lane 0 = sum of per-sample CE over the
    valid rows of this tile, lane 1 = number of correct top-1 predictions.
    """
    i = pl.program_id(0)
    logits = logits_ref[...].astype(jnp.float32)              # (TB, Cp) f32 compute
    labels = labels_ref[...]                                   # (TB, 1) int32
    tb, cp = logits.shape

    # valid-row mask (handles the ragged final batch tile)
    row = jax.lax.broadcasted_iota(jnp.int32, (tb, 1), 0)
    valid = ((i * tile_rows + row) < batch_size).astype(jnp.float32)     # (TB, 1)

    # ---- nn.CrossEntropyLoss (per-sample; summed here, mean taken in wrapper) ----
    m = jnp.max(logits, axis=-1, keepdims=True)                           # (TB, 1)
    lse = m + jnp.log(jnp.sum(jnp.exp(logits - m), axis=-1, keepdims=True))
    cls = jax.lax.broadcasted_iota(jnp.int32, (tb, cp), 1)                # (TB, Cp)
    onehot = (cls == labels).astype(jnp.float32)
    tgt = jnp.sum(logits * onehot, axis=-1, keepdims=True)                # (TB, 1)
    per_sample = (lse - tgt) * valid                                      # (TB, 1)

    # ---- accuracy: reuse m; first-index tie-break matches torch.argmax ----
    is_max = logits == m
    pred = jnp.min(jnp.where(is_max, cls, cp), axis=-1, keepdims=True)    # (TB, 1)
    correct = (pred == labels).astype(jnp.float32) * valid                # (TB, 1)

    # ---- fold both reductions into a single lane-dense cross-sublane sum ----
    lane = jax.lax.broadcasted_iota(jnp.int32, (tb, _LANES), 1)
    packed = (jnp.where(lane == 0, per_sample, 0.0)
              + jnp.where(lane == 1, correct, 0.0))                       # (TB, 128)
    parts_ref[...] = jnp.sum(packed, axis=0, keepdims=True).reshape(1, 1, _LANES)


def cross_entropy_and_accuracy(logits, labels, *, max_tile_rows=512):
    """Pallas-backed nn.CrossEntropyLoss(mean) + top-1 accuracy from update()."""
    B, C = logits.shape
    labels2d = labels.reshape(B, 1).astype(jnp.int32)

    # lane-pad classes to a multiple of 128; pick a batch tile that fits VMEM
    cp = max(_LANES, _round_up(C, _LANES))
    itemsize = jnp.dtype(logits.dtype).itemsize
    rows_budget = max(_SUBLANES,
                      ((1 << 20) // (cp * itemsize)) // _SUBLANES * _SUBLANES)
    tb = max(_SUBLANES, min(max_tile_rows, _round_up(B, _SUBLANES), rows_budget))
    bp = _round_up(B, tb)
    num_tiles = bp // tb

    x = logits  # NOTE: no wrapper-side astype -> kernel reads native dtype (bf16 ok)
    if cp > C:
        x = jnp.concatenate(
            [x, jnp.full((B, cp - C), _NEG_FILL, x.dtype)], axis=1)
    if bp > B:
        x = jnp.concatenate([x, jnp.zeros((bp - B, cp), x.dtype)], axis=0)
        labels2d = jnp.concatenate(
            [labels2d, jnp.zeros((bp - B, 1), jnp.int32)], axis=0)

    kernel = functools.partial(_ce_acc_kernel, batch_size=B, tile_rows=tb)
    parts = pl.pallas_call(
        kernel,
        out_shape=jax.ShapeDtypeStruct((num_tiles, 1, _LANES), jnp.float32),
        grid=(num_tiles,),
        in_specs=[pl.BlockSpec((tb, cp), lambda i: (i, 0)),
                  pl.BlockSpec((tb, 1), lambda i: (i, 0))],
        out_specs=pl.BlockSpec((1, 1, _LANES), lambda i: (i, 0, 0)),
        compiler_params=pltpu.CompilerParams(
            dimension_semantics=("parallel",),
            vmem_limit_bytes=32 * 1024 * 1024),
    )(x, labels2d)

    inv_b = 1.0 / B
    loss = jnp.sum(parts[:, 0, 0]) * inv_b
    acc = jnp.sum(parts[:, 0, 1]) * inv_b
    return loss, acc


class BaseModelJAX:
    """JAX/Pallas mirror of the abstract BaseModel."""

    def __init__(self, n_classes):
        self.n_channels = 1
        self.n_classes = n_classes

    def forward(self, img):
        # TODO(synk): forward is abstract in the PyTorch BaseModel (raises
        # NotImplementedError); subclasses define the CNN.
        raise NotImplementedError

    def loss_and_accuracy(self, logits, ys):
        """Concrete compute of BaseModel.update() given subclass logits."""
        return cross_entropy_and_accuracy(logits, ys)

    @staticmethod
    def split_channels(xs):
        """Glue from update(): img = xs[:, 0:1], mask = xs[:, 1:2] (NCHW)."""
        img = xs[:, 0:1, :, :]
        mask = xs[:, 1:2, :, :]
        return img, mask


if __name__ == "__main__":
    key = jax.random.PRNGKey(0)
    k_xs, k_logits, k_ys = jax.random.split(key, 3)

    B, H, W = 8, 16, 16
    n_classes = 16

    # minibatch with 2 channels (image + mask), NCHW, as used by update()
    xs = jax.random.normal(k_xs, (B, 2, H, W), dtype=jnp.float32)
    # stand-in logits (a subclass's forward would produce these); native bf16
    logits = jax.random.normal(
        k_logits, (B, n_classes), dtype=jnp.float32).astype(jnp.bfloat16)
    ys = jax.random.randint(k_ys, (B,), 0, n_classes, dtype=jnp.int32)

    model = BaseModelJAX(n_classes)
    img, mask = model.split_channels(xs)
    assert img.shape == (B, 1, H, W) and mask.shape == (B, 1, H, W)

    loss, acc = model.loss_and_accuracy(logits, ys)
    loss = jax.block_until_ready(loss)
    acc = jax.block_until_ready(acc)

    # sanity check against a pure-JAX reference (same bf16-quantized inputs)
    lf32 = logits.astype(jnp.float32)
    ref_lse = jax.nn.logsumexp(lf32, axis=-1)
    ref_loss = jnp.mean(ref_lse - lf32[jnp.arange(B), ys])
    ref_acc = jnp.mean((jnp.argmax(lf32, axis=-1) == ys).astype(jnp.float32))
    assert jnp.allclose(loss, ref_loss, atol=1e-4, rtol=1e-4), (loss, ref_loss)
    assert jnp.allclose(acc, ref_acc, atol=1e-6), (acc, ref_acc)

    print("KERNEL_OK")
</pallas_src>

<mosaic_0001>
module attributes {stable_mosaic.version = 11 : i64} {
  func.func @_ce_acc_kernel(%arg0: i32, %arg1: memref<8x128xbf16, #tpu.memory_space<vmem>>, %arg2: memref<8x1xi32, #tpu.memory_space<vmem>>, %arg3: memref<1x1x128xf32, #tpu.memory_space<vmem>>) attributes {dimension_semantics = [#tpu.dimension_semantics<parallel>], iteration_bounds = array<i64: 1>, scalar_prefetch = 0 : i64, scratch_operands = 0 : i64, tpu.core_type = #tpu.core_type<tc>, window_params = [{transform_indices = @transform_0, window_bounds = array<i64: 8, 128>}, {transform_indices = @transform_1, window_bounds = array<i64: 8, 1>}, {transform_indices = @transform_2, window_bounds = array<i64: 1, 1, 128>}]} {
    %c0 = arith.constant 0 : index
    %c0_0 = arith.constant 0 : index
    %0 = vector.load %arg1[%c0, %c0_0] : memref<8x128xbf16, #tpu.memory_space<vmem>>, vector<8x128xbf16>
    %1 = arith.extf %0 : vector<8x128xbf16> to vector<8x128xf32>
    %c0_1 = arith.constant 0 : index
    %c0_2 = arith.constant 0 : index
    %2 = vector.load %arg2[%c0_1, %c0_2] : memref<8x1xi32, #tpu.memory_space<vmem>>, vector<8x1xi32>
    %3 = tpu.iota {dimensions = array<i32: 0>} : vector<8x1xi32>
    %c8_i32 = arith.constant 8 : i32
    %4 = arith.muli %arg0, %c8_i32 : i32
    %5 = vector.broadcast %4 : i32 to vector<8x1xi32>
    %6 = arith.addi %5, %3 : vector<8x1xi32>
    %c8_i32_3 = arith.constant 8 : i32
    %7 = vector.broadcast %c8_i32_3 : i32 to vector<8x1xi32>
    %8 = arith.cmpi slt, %6, %7 : vector<8x1xi32>
    %9 = arith.extui %8 : vector<8x1xi1> to vector<8x1xi32>
    %10 = arith.sitofp %9 : vector<8x1xi32> to vector<8x1xf32>
    %cst = arith.constant dense<0xFF800000> : vector<8xf32>
    %11 = vector.multi_reduction <maximumf>, %1, %cst [1] : vector<8x128xf32> to vector<8xf32>
    %12 = vector.shape_cast %11 : vector<8xf32> to vector<8x1xf32>
    %13 = vector.broadcast %12 : vector<8x1xf32> to vector<8x128xf32>
    %14 = arith.subf %1, %13 : vector<8x128xf32>
    %15 = math.exp %14 : vector<8x128xf32>
    %cst_4 = arith.constant dense<0.000000e+00> : vector<8xf32>
    %16 = vector.multi_reduction <add>, %15, %cst_4 [1] : vector<8x128xf32> to vector<8xf32>
    %17 = vector.shape_cast %16 : vector<8xf32> to vector<8x1xf32>
    %18 = math.log %17 : vector<8x1xf32>
    %19 = arith.addf %12, %18 : vector<8x1xf32>
    %20 = tpu.iota {dimensions = array<i32: 1>} : vector<8x128xi32>
    %21 = vector.broadcast %2 : vector<8x1xi32> to vector<8x128xi32>
    %22 = arith.cmpi eq, %20, %21 : vector<8x128xi32>
    %23 = arith.extui %22 : vector<8x128xi1> to vector<8x128xi32>
    %24 = arith.sitofp %23 : vector<8x128xi32> to vector<8x128xf32>
    %25 = arith.mulf %1, %24 : vector<8x128xf32>
    %cst_5 = arith.constant dense<0.000000e+00> : vector<8xf32>
    %26 = vector.multi_reduction <add>, %25, %cst_5 [1] : vector<8x128xf32> to vector<8xf32>
    %27 = vector.shape_cast %26 : vector<8xf32> to vector<8x1xf32>
    %28 = arith.subf %19, %27 : vector<8x1xf32>
    %29 = arith.mulf %28, %10 : vector<8x1xf32>
    %30 = vector.broadcast %12 : vector<8x1xf32> to vector<8x128xf32>
    %31 = arith.cmpf oeq, %1, %30 : vector<8x128xf32>
    %c128_i32 = arith.constant 128 : i32
    %32 = vector.broadcast %c128_i32 : i32 to vector<8x128xi32>
    %33 = arith.select %31, %20, %32 : vector<8x128xi1>, vector<8x128xi32>
    %cst_6 = arith.constant dense<2147483647> : vector<8xi32>
    %34 = vector.multi_reduction <minsi>, %33, %cst_6 [1] : vector<8x128xi32> to vector<8xi32>
    %35 = vector.shape_cast %34 : vector<8xi32> to vector<8x1xi32>
    %36 = arith.cmpi eq, %35, %2 : vector<8x1xi32>
    %37 = arith.extui %36 : vector<8x1xi1> to vector<8x1xi32>
    %38 = arith.sitofp %37 : vector<8x1xi32> to vector<8x1xf32>
    %39 = arith.mulf %38, %10 : vector<8x1xf32>
    %40 = tpu.iota {dimensions = array<i32: 1>} : vector<8x128xi32>
    %c0_i32 = arith.constant 0 : i32
    %41 = vector.broadcast %c0_i32 : i32 to vector<8x128xi32>
    %42 = arith.cmpi eq, %40, %41 : vector<8x128xi32>
    %cst_7 = arith.constant 0.000000e+00 : f32
    %43 = vector.shape_cast %29 : vector<8x1xf32> to vector<8x1xf32>
    %44 = vector.broadcast %43 : vector<8x1xf32> to vector<8x128xf32>
    %45 = vector.broadcast %cst_7 : f32 to vector<8x128xf32>
    %46 = arith.select %42, %44, %45 : vector<8x128xi1>, vector<8x128xf32>
    %c1_i32 = arith.constant 1 : i32
    %47 = vector.broadcast %c1_i32 : i32 to vector<8x128xi32>
    %48 = arith.cmpi eq, %40, %47 : vector<8x128xi32>
    %cst_8 = arith.constant 0.000000e+00 : f32
    %49 = vector.shape_cast %39 : vector<8x1xf32> to vector<8x1xf32>
    %50 = vector.broadcast %49 : vector<8x1xf32> to vector<8x128xf32>
    %51 = vector.broadcast %cst_8 : f32 to vector<8x128xf32>
    %52 = arith.select %48, %50, %51 : vector<8x128xi1>, vector<8x128xf32>
    %53 = arith.addf %46, %52 : vector<8x128xf32>
    %cst_9 = arith.constant dense<0.000000e+00> : vector<128xf32>
    %54 = vector.multi_reduction <add>, %53, %cst_9 [0] : vector<8x128xf32> to vector<128xf32>
    %55 = vector.shape_cast %54 : vector<128xf32> to vector<1x128xf32>
    %56 = vector.shape_cast %55 : vector<1x128xf32> to vector<1x1x128xf32>
    %c0_10 = arith.constant 0 : index
    %c0_11 = arith.constant 0 : index
    %c0_12 = arith.constant 0 : index
    %57 = vector.load %arg3[%c0_10, %c0_11, %c0_12] : memref<1x1x128xf32, #tpu.memory_space<vmem>>, vector<1x1x128xf32>
    tpu.vector_store %arg3[%c0_10, %c0_11, %c0_12], %56 {strides = array<i32>} : memref<1x1x128xf32, #tpu.memory_space<vmem>>, vector<1x1x128xf32>,
    return
  }
  func.func @transform_0(%arg0: i32) -> (i32, i32) {
    %c0_i32 = arith.constant 0 : i32
    %c0_i32_0 = arith.constant 0 : i32
    return %arg0, %c0_i32 : i32, i32
  }
  func.func @transform_1(%arg0: i32) -> (i32, i32) {
    %c0_i32 = arith.constant 0 : i32
    %c0_i32_0 = arith.constant 0 : i32
    return %arg0, %c0_i32 : i32, i32
  }
  func.func @transform_2(%arg0: i32) -> (i32, i32, i32) {
    %c0_i32 = arith.constant 0 : i32
    %c0_i32_0 = arith.constant 0 : i32
    %c0_i32_1 = arith.constant 0 : i32
    return %arg0, %c0_i32, %c0_i32_0 : i32, i32, i32
  }
}

</mosaic_0001>

<llo_original>
// kernel: tpu_custom_call.1
$region0: #{tpu_custom_call.1}
  #allocation0 [shape = 'u32[]', space=smem, size = 0x4, offset = 0x4, fixed_abs, tag = 'smem constant byte address 0x4 - core index']
  #allocation1 [shape = 'u32[144,128]{1,0:T(1,128)}', space=vmem, size = 0x12000, scoped, tag = 'internal scratch']
  %s0 = inlined_call_operand.vmem [shape: bf16[8,128], index: 0, kind: input, shape index: {}]
  %s1 = inlined_call_operand.vmem [shape: s32[8,1], index: 1, kind: input, shape index: {}]
  %s2 = inlined_call_operand.hbm [shape: f32[1,1,128], index: 2, kind: output, shape index: {}]
  %s3 = sld [smem:[#allocation0]]
  $region18: #{tpu_custom_call.1} parent=0
    _
  %s5 = ssub.s32 1, %s3
  %s6 = scalar_select 0, %s5, %s3
  $region1: #{tpu_custom_call.1} parent=0
    #allocation2 [shape = 'u8[512]{0}', space=vmem, size = 0x400, scoped, tag = 'output window, operand 0, single buffered']
    #allocation3 [shape = 's32[1]{0}', space=sflag, size = 0x4, scoped, tag = 'scoped memory for tpu_custom_call.1']
    %7 = vsyncpa [#allocation3], 0
    // Predicated region
    $region2: #{tpu_custom_call.1} parent=1 // pred_check
      _
    $region3: #{tpu_custom_call.1} parent=1 // pred_check_branch
      %9 = sbr.rel (0) target = $region5
    $region4: #{tpu_custom_call.1} parent=1 // pred_region
      _
    $region5: #{tpu_custom_call.1} parent=1 // pred_fallthru
      _
    // Predicated region
    $region6: #{tpu_custom_call.1} parent=1 // pred_check
      _
    $region7: #{tpu_custom_call.1} parent=1 // pred_check_branch
      %11 = sbr.rel (0) target = $region9
    $region8: #{tpu_custom_call.1} parent=1 // pred_region
      _
    $region9: #{tpu_custom_call.1} parent=1 // pred_fallthru
      _
    %v12 = vld [vmem:[%s0] sm:$0xf]
    %v13 = vunpack.c.l.bf16 %v12
    %v14 = vld [vmem:[%s1] sm:$0xff]
    %v15 = vlaneseq
    %v16 = vshrl.u32 %v15, 7
    %s17 = smul.u32 0, 8
    %v18 = vstv %s17
    %v19 = vadd.s32 %v18, %v16
    %vm20 = vcmp.lt.s32.totalorder %v19, 8
    %v21 = vsel %vm20, 1, 0
    %v22 = vcvt.s32.f32 %v21
    %23 = vmax.xlane.f32.xlu0 %v13
    %v24 = vpop.xlane.xlu0 %23
    %v25 = vsub.f32 %v13, %v24
    %v26 = vmul.f32 %v25, 1.442695
    %v27 = vpow.pop %v26
    %28 = vadd.xlane.f32.xlu0 %v27
    %v29 = vpop.xlane.xlu0 %28
    %v30 = vlog2.pop %v29
    %v31 = vmul.f32 %v30, 0.6931472
    %v32 = vadd.f32 %v24, %v31
    %v33 = vlaneseq
    %v34 = vand.u32 %v33, 127
    %35 = vset.pattern.permute.xlu0 0
    %36 = vperm.xlu0 %35, %v14
    %v37 = vpop.permute.xlu0 %36
    %vm38 = vcmp.eq.s32.totalorder %v34, %v37
    %v39 = vsel %vm38, 1, 0
    %v40 = vcvt.s32.f32 %v39
    %v41 = vmul.f32 %v13, %v40
    %42 = vadd.xlane.f32.xlu0 %v41
    %v43 = vpop.xlane.xlu0 %42
    %v44 = vsub.f32 %v32, %v43
    %v45 = vmul.f32 %v44, %v22
    %vm46 = vcmp.eq.f32.partialorder %v13, %v24
    %v47 = vsel %vm46, %v34, 128
    %v48 = vand.u32 %v47, 65535
    %v49 = vshra.s32 %v47, 16
    %v50 = vcvt.s32.f32 %v48
    %v51 = vcvt.s32.f32 %v49
    %52 = vmin.xlane.f32.xlu0 %v51
    %v53 = vpop.xlane.xlu0 %52
    %vm54 = vcmp.eq.f32.partialorder %v51, %v53
    %v55 = vsel %vm54, %v50, inf
    %56 = vmin.xlane.f32.xlu0 %v55
    %v57 = vpop.xlane.xlu0 %56
    %v58 = vcvt.f32.s32 %v57
    %v59 = vcvt.f32.s32 %v53
    %v60 = vshll.u32 %v59, 16
    %v61 = vadd.s32 %v60, %v58
    %vm62 = vcmp.eq.s32.totalorder %v61, %v14
    %v63 = vsel %vm62, 1, 0
    %v64 = vcvt.s32.f32 %v63
    %v65 = vmul.f32 %v64, %v22
    %vm66 = vcmp.eq.s32.totalorder %v34, 0
    %v67 = vsel %vm66, %v45, 0.0
    %vm68 = vcmp.eq.s32.totalorder %v34, 1
    %70 = vset.pattern.permute.xlu0 0
    %71 = vperm.xlu0 %70, %v65
    %v72 = vpop.permute.xlu0 %71
    %v74 = vsel %vm68, %v72, 0.0
    %v75 = vadd.f32 %v67, %v74
    %v76 = vrot.slane %v75, 4
    %v77 = vadd.f32 %v75, %v76
    %v78 = vrot.slane %v77, 2
    %v79 = vadd.f32 %v77, %v78
    %v80 = vrot.slane %v79, 1
    %v81 = vadd.f32 %v79, %v80
    %82 = vst [vmem:[#allocation2] sm:$0x1] %v81
    // Predicated region
    $region10: #{tpu_custom_call.1} parent=1 // pred_check
      _
    $region11: #{tpu_custom_call.1} parent=1 // pred_check_branch
      %84 = sbr.rel (0) target = $region13
    $region12: #{tpu_custom_call.1} parent=1 // pred_region
      %s86 = ssub.s32 16, 16
      %87 = vsyncadd [#allocation3], %s86
      %s89 = sshll.u32 [#allocation2], 4
      %s90 = int_to_ptr.vmem [resolvable:$true] %s89
      %92 = dma.vmem_to_hbm [thread:$0]  %s90, 16, %s2, [#allocation3]
    $region13: #{tpu_custom_call.1} parent=1 // pred_fallthru
      _
    // Predicated region
    $region14: #{tpu_custom_call.1} parent=1 // pred_check
      _
    $region15: #{tpu_custom_call.1} parent=1 // pred_check_branch
      %94 = sbr.rel (0) target = $region17
    $region16: #{tpu_custom_call.1} parent=1 // pred_region
      %95 = dma.done [#allocation3], 16
    $region17: #{tpu_custom_call.1} parent=1 // pred_fallthru
      _
    %96 = vsyncpa [#allocation3], 1

</llo_original>
